<compile_context>
chip_gen: v7x
topology: tpu7x:2x2x1
jax: 0.10.0
libtpu: 0.0.40
codegen_flags: <defaults>
</compile_context>

<pallas_src>
import math

import jax
import jax.numpy as jnp
from jax.experimental import pallas as pl
from jax.experimental.pallas import tpu as pltpu

# ----------------------------- config ---------------------------------------
QUERY_KEYS = ("pose", "trans")      # already sorted (module sorts query_keys)
QUERY_DIMS = (6, 3)
LATENT_DIM = 32
HALF_DIM = LATENT_DIM // 2
NUM_LAYERS = 4
BATCH = 8

TOTAL_IN = sum(QUERY_DIMS) + 1      # 10  (queries + time)
AUG_IN = TOTAL_IN + 1               # 11  (+ ones column for layer-0 bias)
IN_PAD = 16                         # padded input width (multiple of 8)
TOTAL_OUT = sum(QUERY_DIMS)         # 9

# packed-slab row offsets (all multiples of 8)
_OFF_W0 = 0                                  # (16, 32)  W0 rows 0..9, b0 row 10, zero pad
_OFF_W = [16 + 32 * i for i in range(NUM_LAYERS - 1)]   # 16, 48, 80 : (32, 32) each
_OFF_WH1 = 112                               # (32, 32)  fused head layer-1 weights
_OFF_WH2 = 144                               # (32, 32)  block-diagonal head layer-2 weights
_OFF_BIAS = 176                              # (8, 32)   rows 0..2: fe b1..b3, row 3: head b1, row 4: head b2
SLAB_ROWS = 184

_VMEM = pl.BlockSpec(memory_space=pltpu.MemorySpace.VMEM)


# ----------------------------- helpers --------------------------------------
def _gelu(x):
    c = math.sqrt(2.0 / math.pi)
    return 0.5 * x * (1.0 + jnp.tanh(c * (x + 0.044715 * x * x * x)))


# ----------------------------- fused Pallas kernel --------------------------
def _fused_mlp_kernel(x_ref, w_ref, o_ref):
    """Entire forward in one step; weights live in a single (184, 32) VMEM slab.

    x_ref : (B, 16)  = [pose(6) | trans(3) | time(1) | ones(1) | zeros(5)]
    w_ref : (184, 32) packed weights/biases (see row offsets above)
    o_ref : (B, 9)   = [pose_out(6) | trans_out(3)]
    """
    f32 = jnp.float32
    x = x_ref[...]                                        # (B, 16)
    biases = w_ref[_OFF_BIAS:_OFF_BIAS + 8, :]            # (8, 32)

    # ---- feature extractor, layer 0 (bias folded via ones column) ----------
    h = _gelu(jnp.dot(x, w_ref[_OFF_W0:_OFF_W0 + IN_PAD, :],
                      preferred_element_type=f32))        # (B, 32)

    # ---- feature extractor, layers 1..L-1 -----------------------------------
    for li in range(1, NUM_LAYERS):
        off = _OFF_W[li - 1]
        w = w_ref[off:off + LATENT_DIM, :]
        h = _gelu(jnp.dot(h, w, preferred_element_type=f32)
                  + biases[li - 1:li, :])

    # ---- fused output heads + residual --------------------------------------
    hh = _gelu(jnp.dot(h, w_ref[_OFF_WH1:_OFF_WH1 + LATENT_DIM, :],
                       preferred_element_type=f32)
               + biases[3:4, :])                          # (B, 32) [pose_h | trans_h]
    y = jnp.dot(hh, w_ref[_OFF_WH2:_OFF_WH2 + LATENT_DIM, :],
                preferred_element_type=f32) + biases[4:5, :]   # (B, 32), cols 0..8 valid

    o_ref[...] = x[:, 0:TOTAL_OUT] + y[:, 0:TOTAL_OUT]    # residual = [pose|trans]


# ----------------------------- weight packing --------------------------------
def pack_params(params):
    """Pack all weights/biases into one (184, 32) f32 slab (done once at import)."""
    d = LATENT_DIM
    f32 = jnp.float32

    # layer 0: rows 0..9 = W0, row 10 = b0 (ones column in input), rows 11..15 = 0
    w0 = params["fe"][0]["w"].astype(f32)                 # (10, 32)
    b0 = params["fe"][0]["b"].astype(f32)                 # (1, 32)
    w0_aug = jnp.concatenate(
        [w0, b0, jnp.zeros((IN_PAD - AUG_IN, d), f32)], axis=0)   # (16, 32)
    blocks = [w0_aug]

    # layers 1..3: (32, 32) each
    for li in range(1, NUM_LAYERS):
        blocks.append(params["fe"][li]["w"].astype(f32))

    # fused head layer-1 weights: concat along output dim -> (32, 32)
    wh1 = jnp.concatenate(
        [params["heads"][k][0]["w"].astype(f32) for k in QUERY_KEYS], axis=1)
    blocks.append(wh1)

    # block-diagonal head layer-2 weights: (32, 32), cols 0..8 used
    wh2 = jnp.zeros((d, d), f32)
    row_off, col_off = 0, 0
    for k, dim in zip(QUERY_KEYS, QUERY_DIMS):
        wk = params["heads"][k][1]["w"].astype(f32)       # (16, dim)
        wh2 = wh2.at[row_off:row_off + HALF_DIM, col_off:col_off + dim].set(wk)
        row_off += HALF_DIM
        col_off += dim
    blocks.append(wh2)

    # bias block (8, 32): rows 0..2 fe b1..b3, row 3 fused head b1, row 4 fused head b2
    bias = jnp.zeros((8, d), f32)
    for li in range(1, NUM_LAYERS):
        bias = bias.at[li - 1, :].set(params["fe"][li]["b"].astype(f32)[0])
    bh1 = jnp.concatenate(
        [params["heads"][k][0]["b"].astype(f32)[0] for k in QUERY_KEYS], axis=0)   # (32,)
    bias = bias.at[3, :].set(bh1)
    bh2 = jnp.concatenate(
        [params["heads"][k][1]["b"].astype(f32)[0] for k in QUERY_KEYS], axis=0)   # (9,)
    bias = bias.at[4, 0:TOTAL_OUT].set(bh2)
    blocks.append(bias)

    slab = jnp.concatenate(blocks, axis=0)
    assert slab.shape == (SLAB_ROWS, d), slab.shape
    return slab


# ----------------------------- wrapper ---------------------------------------
def forward(packed_w, query, time_step):
    """query: dict key -> (B, dim_k); time_step: (B,).  Returns dict key -> (B, dim_k)."""
    bs = time_step.shape[0]
    q_list = [query[k].astype(jnp.float32) for k in QUERY_KEYS]
    ts = time_step.astype(jnp.float32).reshape(bs, 1)
    ones = jnp.ones((bs, 1), jnp.float32)
    pad = jnp.zeros((bs, IN_PAD - AUG_IN), jnp.float32)
    x = jnp.concatenate(q_list + [ts, ones, pad], axis=1)   # (B, 16)

    out = pl.pallas_call(
        _fused_mlp_kernel,
        out_shape=jax.ShapeDtypeStruct((bs, TOTAL_OUT), jnp.float32),
        in_specs=[_VMEM, _VMEM],
        out_specs=_VMEM,
    )(x, packed_w)

    res = {}
    off = 0
    for k, dim in zip(QUERY_KEYS, QUERY_DIMS):
        res[k] = out[:, off:off + dim]
        off += dim
    return res


# ----------------------------- pure-JAX reference ----------------------------
def forward_ref(params, query, time_step):
    q_list = [query[k].astype(jnp.float32) for k in QUERY_KEYS]
    ts = time_step.astype(jnp.float32).reshape(-1, 1)
    h = jnp.concatenate(q_list + [ts], axis=1)
    for layer in params["fe"]:
        h = _gelu(jnp.dot(h, layer["w"],
                          precision=jax.lax.Precision.HIGHEST) + layer["b"])
    out = {}
    for k, q in zip(QUERY_KEYS, q_list):
        b1, b2 = params["heads"][k]
        hh = _gelu(jnp.dot(h, b1["w"],
                           precision=jax.lax.Precision.HIGHEST) + b1["b"])
        out[k] = q + jnp.dot(hh, b2["w"],
                             precision=jax.lax.Precision.HIGHEST) + b2["b"]
    return out


# ----------------------------- parameter init --------------------------------
def init_params(key):
    d = LATENT_DIM
    half = HALF_DIM

    fe = []
    din = TOTAL_IN
    for li in range(NUM_LAYERS):
        k = jax.random.fold_in(key, li)
        fe.append({"w": jax.random.normal(k, (din, d), jnp.float32) * 0.05,
                   "b": jnp.zeros((1, d), jnp.float32)})
        din = d

    heads = {}
    for i, (kname, dim) in enumerate(zip(QUERY_KEYS, QUERY_DIMS)):
        k1 = jax.random.fold_in(key, 100 + 2 * i)
        k2 = jax.random.fold_in(key, 101 + 2 * i)
        heads[kname] = [
            {"w": jax.random.normal(k1, (d, half), jnp.float32) * 0.05,
             "b": jnp.zeros((1, half), jnp.float32)},
            {"w": jax.random.normal(k2, (half, dim), jnp.float32) * 0.05,
             "b": jnp.zeros((1, dim), jnp.float32)},
        ]
    return {"fe": fe, "heads": heads}


# ----------------------------- main -------------------------------------------
if __name__ == "__main__":
    root = jax.random.PRNGKey(0)
    kp, kq, kt = jax.random.split(root, 3)

    params = init_params(kp)
    packed_w = jax.block_until_ready(pack_params(params))   # one-time packing

    query = {}
    for i, (k, dim) in enumerate(zip(QUERY_KEYS, QUERY_DIMS)):
        query[k] = jax.random.normal(jax.random.fold_in(kq, i),
                                     (BATCH, dim), jnp.float32)
    time_step = jax.random.randint(kt, (BATCH,), 0, 1000,
                                   jnp.int32).astype(jnp.float32)

    out = forward(packed_w, query, time_step)
    out = jax.tree_util.tree_map(jax.block_until_ready, out)

    ref = forward_ref(params, query, time_step)
    for k, dim in zip(QUERY_KEYS, QUERY_DIMS):
        assert out[k].shape == (BATCH, dim), (k, out[k].shape)
        assert bool(jnp.all(jnp.isfinite(out[k]))), k
        assert bool(jnp.allclose(out[k], ref[k], atol=1e-3, rtol=1e-3)), k

    print("KERNEL_OK")
</pallas_src>

<mosaic_0001>
module attributes {stable_mosaic.version = 11 : i64} {
  func.func @_fused_mlp_kernel(%arg0: memref<8x16xf32, #tpu.memory_space<vmem>>, %arg1: memref<184x32xf32, #tpu.memory_space<vmem>>, %arg2: memref<8x9xf32, #tpu.memory_space<vmem>>) attributes {dimension_semantics = [], scalar_prefetch = 0 : i64, scratch_operands = 0 : i64, tpu.core_type = #tpu.core_type<tc>} {
    %c0 = arith.constant 0 : index
    %c0_0 = arith.constant 0 : index
    %0 = vector.load %arg0[%c0, %c0_0] : memref<8x16xf32, #tpu.memory_space<vmem>>, vector<8x16xf32>
    %c176 = arith.constant 176 : index
    %c0_1 = arith.constant 0 : index
    %1 = vector.load %arg1[%c176, %c0_1] : memref<184x32xf32, #tpu.memory_space<vmem>>, vector<8x32xf32>
    %c0_2 = arith.constant 0 : index
    %c0_3 = arith.constant 0 : index
    %2 = vector.load %arg1[%c0_2, %c0_3] : memref<184x32xf32, #tpu.memory_space<vmem>>, vector<16x32xf32>
    %cst = arith.constant dense<0.000000e+00> : vector<8x32xf32>
    %3 = tpu.matmul %0, %2, %cst {dimension_numbers = #tpu.dot_dimension_numbers<[1], [0], [0], [1], [0, 0, 1, 1], [], []>} : vector<8x16xf32>, vector<16x32xf32>, vector<8x32xf32> -> vector<8x32xf32>
    %cst_4 = arith.constant 5.000000e-01 : f32
    %4 = vector.broadcast %cst_4 : f32 to vector<8x32xf32>
    %5 = arith.mulf %4, %3 : vector<8x32xf32>
    %cst_5 = arith.constant 4.471500e-02 : f32
    %6 = vector.broadcast %cst_5 : f32 to vector<8x32xf32>
    %7 = arith.mulf %6, %3 : vector<8x32xf32>
    %8 = arith.mulf %7, %3 : vector<8x32xf32>
    %9 = arith.mulf %8, %3 : vector<8x32xf32>
    %10 = arith.addf %3, %9 : vector<8x32xf32>
    %cst_6 = arith.constant 0.797884583 : f32
    %11 = vector.broadcast %cst_6 : f32 to vector<8x32xf32>
    %12 = arith.mulf %11, %10 : vector<8x32xf32>
    %13 = math.tanh %12 : vector<8x32xf32>
    %cst_7 = arith.constant 1.000000e+00 : f32
    %14 = vector.broadcast %cst_7 : f32 to vector<8x32xf32>
    %15 = arith.addf %14, %13 : vector<8x32xf32>
    %16 = arith.mulf %5, %15 : vector<8x32xf32>
    %c16 = arith.constant 16 : index
    %c0_8 = arith.constant 0 : index
    %17 = vector.load %arg1[%c16, %c0_8] : memref<184x32xf32, #tpu.memory_space<vmem>>, vector<32x32xf32>
    %cst_9 = arith.constant dense<0.000000e+00> : vector<8x32xf32>
    %18 = tpu.matmul %16, %17, %cst_9 {dimension_numbers = #tpu.dot_dimension_numbers<[1], [0], [0], [1], [0, 0, 1, 1], [], []>} : vector<8x32xf32>, vector<32x32xf32>, vector<8x32xf32> -> vector<8x32xf32>
    %19 = vector.extract_strided_slice %1 {offsets = [0, 0], sizes = [1, 32], strides = [1, 1]} : vector<8x32xf32> to vector<1x32xf32>
    %20 = vector.broadcast %19 : vector<1x32xf32> to vector<8x32xf32>
    %21 = arith.addf %18, %20 : vector<8x32xf32>
    %cst_10 = arith.constant 5.000000e-01 : f32
    %22 = vector.broadcast %cst_10 : f32 to vector<8x32xf32>
    %23 = arith.mulf %22, %21 : vector<8x32xf32>
    %cst_11 = arith.constant 4.471500e-02 : f32
    %24 = vector.broadcast %cst_11 : f32 to vector<8x32xf32>
    %25 = arith.mulf %24, %21 : vector<8x32xf32>
    %26 = arith.mulf %25, %21 : vector<8x32xf32>
    %27 = arith.mulf %26, %21 : vector<8x32xf32>
    %28 = arith.addf %21, %27 : vector<8x32xf32>
    %cst_12 = arith.constant 0.797884583 : f32
    %29 = vector.broadcast %cst_12 : f32 to vector<8x32xf32>
    %30 = arith.mulf %29, %28 : vector<8x32xf32>
    %31 = math.tanh %30 : vector<8x32xf32>
    %cst_13 = arith.constant 1.000000e+00 : f32
    %32 = vector.broadcast %cst_13 : f32 to vector<8x32xf32>
    %33 = arith.addf %32, %31 : vector<8x32xf32>
    %34 = arith.mulf %23, %33 : vector<8x32xf32>
    %c48 = arith.constant 48 : index
    %c0_14 = arith.constant 0 : index
    %35 = vector.load %arg1[%c48, %c0_14] : memref<184x32xf32, #tpu.memory_space<vmem>>, vector<32x32xf32>
    %cst_15 = arith.constant dense<0.000000e+00> : vector<8x32xf32>
    %36 = tpu.matmul %34, %35, %cst_15 {dimension_numbers = #tpu.dot_dimension_numbers<[1], [0], [0], [1], [0, 0, 1, 1], [], []>} : vector<8x32xf32>, vector<32x32xf32>, vector<8x32xf32> -> vector<8x32xf32>
    %37 = vector.extract_strided_slice %1 {offsets = [1, 0], sizes = [1, 32], strides = [1, 1]} : vector<8x32xf32> to vector<1x32xf32>
    %38 = vector.broadcast %37 : vector<1x32xf32> to vector<8x32xf32>
    %39 = arith.addf %36, %38 : vector<8x32xf32>
    %cst_16 = arith.constant 5.000000e-01 : f32
    %40 = vector.broadcast %cst_16 : f32 to vector<8x32xf32>
    %41 = arith.mulf %40, %39 : vector<8x32xf32>
    %cst_17 = arith.constant 4.471500e-02 : f32
    %42 = vector.broadcast %cst_17 : f32 to vector<8x32xf32>
    %43 = arith.mulf %42, %39 : vector<8x32xf32>
    %44 = arith.mulf %43, %39 : vector<8x32xf32>
    %45 = arith.mulf %44, %39 : vector<8x32xf32>
    %46 = arith.addf %39, %45 : vector<8x32xf32>
    %cst_18 = arith.constant 0.797884583 : f32
    %47 = vector.broadcast %cst_18 : f32 to vector<8x32xf32>
    %48 = arith.mulf %47, %46 : vector<8x32xf32>
    %49 = math.tanh %48 : vector<8x32xf32>
    %cst_19 = arith.constant 1.000000e+00 : f32
    %50 = vector.broadcast %cst_19 : f32 to vector<8x32xf32>
    %51 = arith.addf %50, %49 : vector<8x32xf32>
    %52 = arith.mulf %41, %51 : vector<8x32xf32>
    %c80 = arith.constant 80 : index
    %c0_20 = arith.constant 0 : index
    %53 = vector.load %arg1[%c80, %c0_20] : memref<184x32xf32, #tpu.memory_space<vmem>>, vector<32x32xf32>
    %cst_21 = arith.constant dense<0.000000e+00> : vector<8x32xf32>
    %54 = tpu.matmul %52, %53, %cst_21 {dimension_numbers = #tpu.dot_dimension_numbers<[1], [0], [0], [1], [0, 0, 1, 1], [], []>} : vector<8x32xf32>, vector<32x32xf32>, vector<8x32xf32> -> vector<8x32xf32>
    %55 = vector.extract_strided_slice %1 {offsets = [2, 0], sizes = [1, 32], strides = [1, 1]} : vector<8x32xf32> to vector<1x32xf32>
    %56 = vector.broadcast %55 : vector<1x32xf32> to vector<8x32xf32>
    %57 = arith.addf %54, %56 : vector<8x32xf32>
    %cst_22 = arith.constant 5.000000e-01 : f32
    %58 = vector.broadcast %cst_22 : f32 to vector<8x32xf32>
    %59 = arith.mulf %58, %57 : vector<8x32xf32>
    %cst_23 = arith.constant 4.471500e-02 : f32
    %60 = vector.broadcast %cst_23 : f32 to vector<8x32xf32>
    %61 = arith.mulf %60, %57 : vector<8x32xf32>
    %62 = arith.mulf %61, %57 : vector<8x32xf32>
    %63 = arith.mulf %62, %57 : vector<8x32xf32>
    %64 = arith.addf %57, %63 : vector<8x32xf32>
    %cst_24 = arith.constant 0.797884583 : f32
    %65 = vector.broadcast %cst_24 : f32 to vector<8x32xf32>
    %66 = arith.mulf %65, %64 : vector<8x32xf32>
    %67 = math.tanh %66 : vector<8x32xf32>
    %cst_25 = arith.constant 1.000000e+00 : f32
    %68 = vector.broadcast %cst_25 : f32 to vector<8x32xf32>
    %69 = arith.addf %68, %67 : vector<8x32xf32>
    %70 = arith.mulf %59, %69 : vector<8x32xf32>
    %c112 = arith.constant 112 : index
    %c0_26 = arith.constant 0 : index
    %71 = vector.load %arg1[%c112, %c0_26] : memref<184x32xf32, #tpu.memory_space<vmem>>, vector<32x32xf32>
    %cst_27 = arith.constant dense<0.000000e+00> : vector<8x32xf32>
    %72 = tpu.matmul %70, %71, %cst_27 {dimension_numbers = #tpu.dot_dimension_numbers<[1], [0], [0], [1], [0, 0, 1, 1], [], []>} : vector<8x32xf32>, vector<32x32xf32>, vector<8x32xf32> -> vector<8x32xf32>
    %73 = vector.extract_strided_slice %1 {offsets = [3, 0], sizes = [1, 32], strides = [1, 1]} : vector<8x32xf32> to vector<1x32xf32>
    %74 = vector.broadcast %73 : vector<1x32xf32> to vector<8x32xf32>
    %75 = arith.addf %72, %74 : vector<8x32xf32>
    %cst_28 = arith.constant 5.000000e-01 : f32
    %76 = vector.broadcast %cst_28 : f32 to vector<8x32xf32>
    %77 = arith.mulf %76, %75 : vector<8x32xf32>
    %cst_29 = arith.constant 4.471500e-02 : f32
    %78 = vector.broadcast %cst_29 : f32 to vector<8x32xf32>
    %79 = arith.mulf %78, %75 : vector<8x32xf32>
    %80 = arith.mulf %79, %75 : vector<8x32xf32>
    %81 = arith.mulf %80, %75 : vector<8x32xf32>
    %82 = arith.addf %75, %81 : vector<8x32xf32>
    %cst_30 = arith.constant 0.797884583 : f32
    %83 = vector.broadcast %cst_30 : f32 to vector<8x32xf32>
    %84 = arith.mulf %83, %82 : vector<8x32xf32>
    %85 = math.tanh %84 : vector<8x32xf32>
    %cst_31 = arith.constant 1.000000e+00 : f32
    %86 = vector.broadcast %cst_31 : f32 to vector<8x32xf32>
    %87 = arith.addf %86, %85 : vector<8x32xf32>
    %88 = arith.mulf %77, %87 : vector<8x32xf32>
    %c144 = arith.constant 144 : index
    %c0_32 = arith.constant 0 : index
    %89 = vector.load %arg1[%c144, %c0_32] : memref<184x32xf32, #tpu.memory_space<vmem>>, vector<32x32xf32>
    %cst_33 = arith.constant dense<0.000000e+00> : vector<8x32xf32>
    %90 = tpu.matmul %88, %89, %cst_33 {dimension_numbers = #tpu.dot_dimension_numbers<[1], [0], [0], [1], [0, 0, 1, 1], [], []>} : vector<8x32xf32>, vector<32x32xf32>, vector<8x32xf32> -> vector<8x32xf32>
    %91 = vector.extract_strided_slice %1 {offsets = [4, 0], sizes = [1, 32], strides = [1, 1]} : vector<8x32xf32> to vector<1x32xf32>
    %92 = vector.broadcast %91 : vector<1x32xf32> to vector<8x32xf32>
    %93 = arith.addf %90, %92 : vector<8x32xf32>
    %94 = vector.extract_strided_slice %0 {offsets = [0, 0], sizes = [8, 9], strides = [1, 1]} : vector<8x16xf32> to vector<8x9xf32>
    %95 = vector.extract_strided_slice %93 {offsets = [0, 0], sizes = [8, 9], strides = [1, 1]} : vector<8x32xf32> to vector<8x9xf32>
    %96 = arith.addf %94, %95 : vector<8x9xf32>
    %c0_34 = arith.constant 0 : index
    %c0_35 = arith.constant 0 : index
    %97 = vector.load %arg2[%c0_34, %c0_35] : memref<8x9xf32, #tpu.memory_space<vmem>>, vector<8x9xf32>
    tpu.vector_store %arg2[%c0_34, %c0_35], %96 {strides = array<i32>} : memref<8x9xf32, #tpu.memory_space<vmem>>, vector<8x9xf32>,
    return
  }
}

</mosaic_0001>

<llo_original>
// kernel: tpu_custom_call.1
$region0: #{tpu_custom_call.1}
  #allocation0 [shape = 'u32[]', space=smem, size = 0x4, offset = 0x4, fixed_abs, tag = 'smem constant byte address 0x4 - core index']
  #allocation1 [shape = 'u32[144,128]{1,0:T(1,128)}', space=vmem, size = 0x12000, scoped, tag = 'internal scratch']
  %s0 = inlined_call_operand.vmem [shape: f32[8,16], index: 0, kind: input, shape index: {}]
  %s1 = inlined_call_operand.vmem [shape: f32[184,32], index: 1, kind: input, shape index: {}]
  %s2 = inlined_call_operand.hbm [shape: f32[8,9], index: 2, kind: output, shape index: {}]
  %s3 = sld [smem:[#allocation0]]
  $region18: #{tpu_custom_call.1} parent=0
    _
  %s5 = ssub.s32 1, %s3
  %s6 = scalar_select 0, %s5, %s3
  $region1: #{tpu_custom_call.1} parent=0
    #allocation2 [shape = 'u8[4096]{0}', space=vmem, size = 0x1000, scoped, tag = 'output window, operand 0, single buffered']
    #allocation3 [shape = 's32[1]{0}', space=sflag, size = 0x4, scoped, tag = 'scoped memory for tpu_custom_call.1']
    %7 = vsyncpa [#allocation3], 0
    // Predicated region
    $region2: #{tpu_custom_call.1} parent=1 // pred_check
      _
    $region3: #{tpu_custom_call.1} parent=1 // pred_check_branch
      %9 = sbr.rel (0) target = $region5
    $region4: #{tpu_custom_call.1} parent=1 // pred_region
      _
    $region5: #{tpu_custom_call.1} parent=1 // pred_fallthru
      _
    // Predicated region
    $region6: #{tpu_custom_call.1} parent=1 // pred_check
      _
    $region7: #{tpu_custom_call.1} parent=1 // pred_check_branch
      %11 = sbr.rel (0) target = $region9
    $region8: #{tpu_custom_call.1} parent=1 // pred_region
      _
    $region9: #{tpu_custom_call.1} parent=1 // pred_fallthru
      _
    %v12 = vld [vmem:[%s0] sm:$0xff]
    %v13 = vld [vmem:[%s1 + $0xb0] sm:$0xff]
    %v14 = vld [vmem:[%s1] sm:$0xff]
    %v15 = vld [vmem:[%s1 + $0x8] sm:$0xff]
    %vm16 = vcmask 130048
    %v18 = vsel %vm16, %v12, 0
    %20 = vmatprep.subr.mxu0 0.0
    %21 = vmatpush1.msra.mxu0 %v14
    %22 = vmatprep.subr.mxu0 0.0
    %23 = vmatpush1.msra.mxu0 %v15
    %24 = vmatprep.subr.mxu0 0.0
    %25 = vmatpush1.msra.mxu0 0.0
    %26 = vmatprep.subr.mxu0 0.0
    %27 = vmatpush1.msra.mxu0 0.0
    %28 = vmatprep.subr.mxu0 0.0
    %29 = vmatpush1.msra.mxu0 0.0
    %30 = vmatprep.subr.mxu0 0.0
    %31 = vmatpush1.msra.mxu0 0.0
    %32 = vmatprep.subr.mxu0 0.0
    %33 = vmatpush1.msra.mxu0 0.0
    %34 = vmatprep.subr.mxu0 0.0
    %35 = vmatpush1.msra.mxu0 0.0
    %36 = vmatprep.subr.mxu0 0.0
    %37 = vmatpush1.msra.mxu0 0.0
    %38 = vmatprep.subr.mxu0 0.0
    %39 = vmatpush1.msra.mxu0 0.0
    %40 = vmatprep.subr.mxu0 0.0
    %41 = vmatpush1.msra.mxu0 0.0
    %42 = vmatprep.subr.mxu0 0.0
    %43 = vmatpush1.msra.mxu0 0.0
    %44 = vmatprep.subr.mxu0 0.0
    %45 = vmatpush1.msra.mxu0 0.0
    %46 = vmatprep.subr.mxu0 0.0
    %47 = vmatpush1.msra.mxu0 0.0
    %48 = vmatprep.subr.mxu0 0.0
    %49 = vmatpush1.msra.mxu0 0.0
    %50 = vmatprep.subr.mxu0 0.0
    %51 = vmatpush1.msra.mxu0 0.0
    %52 = vmatprep.subr.mxu0 0.0
    %53 = vmatpush1.msra.mxu0 0.0
    %54 = vmatprep.subr.mxu0 0.0
    %55 = vmatpush1.msra.mxu0 0.0
    %56 = vmatprep.subr.mxu0 0.0
    %57 = vmatpush1.msra.mxu0 0.0
    %58 = vmatprep.subr.mxu0 0.0
    %59 = vmatpush1.msra.mxu0 0.0
    %60 = vmatprep.subr.mxu0 0.0
    %61 = vmatpush1.msra.mxu0 0.0
    %62 = vmatprep.subr.mxu0 0.0
    %63 = vmatpush1.msra.mxu0 0.0
    %64 = vmatprep.subr.mxu0 0.0
    %65 = vmatpush1.msra.mxu0 0.0
    %66 = vmatprep.subr.mxu0 0.0
    %67 = vmatpush1.msra.mxu0 0.0
    %68 = vmatprep.subr.mxu0 0.0
    %69 = vmatpush1.msra.mxu0 0.0
    %70 = vmatprep.subr.mxu0 0.0
    %71 = vmatpush1.msra.mxu0 0.0
    %72 = vmatprep.subr.mxu0 0.0
    %73 = vmatpush1.msra.mxu0 0.0
    %74 = vmatprep.subr.mxu0 0.0
    %75 = vmatpush1.msra.mxu0 0.0
    %76 = vmatprep.subr.mxu0 0.0
    %77 = vmatpush1.msra.mxu0 0.0
    %78 = vmatprep.subr.mxu0 0.0
    %79 = vmatpush1.msra.mxu0 0.0
    %80 = vmatprep.subr.mxu0 0.0
    %81 = vmatpush1.msra.mxu0 0.0
    %82 = vmatprep.subr.mxu0 0.0
    %83 = vmatpush1.msra.mxu0 0.0
    %84 = vmatprep.mubr.f32.mxu0 0.0
    %85 = vmatmul.mubr.f32.gmra.mrb[0].mxu0 %v18
    %v86 = vpop.f32.mrb[0].mxu0
    %v87 = vadd.f32 0.0, %v86
    %v88 = vpop.f32.mrb[0].mxu0
    %89 = vdwg.mxu0
    %v90 = vmul.f32 %v87, 0.5
    %v91 = vmul.f32 %v87, 0.044715
    %v92 = vmul.f32 %v91, %v87
    %v93 = vmul.f32 %v92, %v87
    %v94 = vadd.f32 %v87, %v93
    %v95 = vmul.f32 %v94, 0.7978846
    %v96 = vtanh.pop %v95
    %v97 = vadd.f32 %v96, 1.0
    %v98 = vmul.f32 %v90, %v97
    %v99 = vld [vmem:[%s1 + $0x10] sm:$0xff]
    %v100 = vld [vmem:[%s1 + $0x18] sm:$0xff]
    %v101 = vld [vmem:[%s1 + $0x20] sm:$0xff]
    %v102 = vld [vmem:[%s1 + $0x28] sm:$0xff]
    %v103 = vlaneseq
    %v104 = vshrl.u32 %v103, 7
    %v105 = vsub.s32 0, %v104
    %v106 = vrot.slane %v13, %v105
    %vm107 = vcmask 261120
    %v109 = vsel %vm107, %v98, 0
    %111 = vmatprep.subr.mxu0 0.0
    %112 = vmatpush1.msra.mxu0 %v99
    %113 = vmatprep.subr.mxu0 0.0
    %114 = vmatpush1.msra.mxu0 %v100
    %115 = vmatprep.subr.mxu0 0.0
    %116 = vmatpush1.msra.mxu0 %v101
    %117 = vmatprep.subr.mxu0 0.0
    %118 = vmatpush1.msra.mxu0 %v102
    %119 = vmatprep.subr.mxu0 0.0
    %120 = vmatpush1.msra.mxu0 0.0
    %121 = vmatprep.subr.mxu0 0.0
    %122 = vmatpush1.msra.mxu0 0.0
    %123 = vmatprep.subr.mxu0 0.0
    %124 = vmatpush1.msra.mxu0 0.0
    %125 = vmatprep.subr.mxu0 0.0
    %126 = vmatpush1.msra.mxu0 0.0
    %127 = vmatprep.subr.mxu0 0.0
    %128 = vmatpush1.msra.mxu0 0.0
    %129 = vmatprep.subr.mxu0 0.0
    %130 = vmatpush1.msra.mxu0 0.0
    %131 = vmatprep.subr.mxu0 0.0
    %132 = vmatpush1.msra.mxu0 0.0
    %133 = vmatprep.subr.mxu0 0.0
    %134 = vmatpush1.msra.mxu0 0.0
    %135 = vmatprep.subr.mxu0 0.0
    %136 = vmatpush1.msra.mxu0 0.0
    %137 = vmatprep.subr.mxu0 0.0
    %138 = vmatpush1.msra.mxu0 0.0
    %139 = vmatprep.subr.mxu0 0.0
    %140 = vmatpush1.msra.mxu0 0.0
    %141 = vmatprep.subr.mxu0 0.0
    %142 = vmatpush1.msra.mxu0 0.0
    %143 = vmatprep.subr.mxu0 0.0
    %144 = vmatpush1.msra.mxu0 0.0
    %145 = vmatprep.subr.mxu0 0.0
    %146 = vmatpush1.msra.mxu0 0.0
    %147 = vmatprep.subr.mxu0 0.0
    %148 = vmatpush1.msra.mxu0 0.0
    %149 = vmatprep.subr.mxu0 0.0
    %150 = vmatpush1.msra.mxu0 0.0
    %151 = vmatprep.subr.mxu0 0.0
    %152 = vmatpush1.msra.mxu0 0.0
    %153 = vmatprep.subr.mxu0 0.0
    %154 = vmatpush1.msra.mxu0 0.0
    %155 = vmatprep.subr.mxu0 0.0
    %156 = vmatpush1.msra.mxu0 0.0
    %157 = vmatprep.subr.mxu0 0.0
    %158 = vmatpush1.msra.mxu0 0.0
    %159 = vmatprep.subr.mxu0 0.0
    %160 = vmatpush1.msra.mxu0 0.0
    %161 = vmatprep.subr.mxu0 0.0
    %162 = vmatpush1.msra.mxu0 0.0
    %163 = vmatprep.subr.mxu0 0.0
    %164 = vmatpush1.msra.mxu0 0.0
    %165 = vmatprep.subr.mxu0 0.0
    %166 = vmatpush1.msra.mxu0 0.0
    %167 = vmatprep.subr.mxu0 0.0
    %168 = vmatpush1.msra.mxu0 0.0
    %169 = vmatprep.subr.mxu0 0.0
    %170 = vmatpush1.msra.mxu0 0.0
    %171 = vmatprep.subr.mxu0 0.0
    %172 = vmatpush1.msra.mxu0 0.0
    %173 = vmatprep.subr.mxu0 0.0
    %174 = vmatpush1.msra.mxu0 0.0
    %175 = vmatprep.mubr.f32.mxu0 0.0
    %176 = vmatmul.mubr.f32.gmra.mrb[0].mxu0 %v109
    %v177 = vpop.f32.mrb[0].mxu0
    %v178 = vadd.f32 %v106, %v177
    %v179 = vpop.f32.mrb[0].mxu0
    %180 = vdwg.mxu0
    %v181 = vmul.f32 %v178, 0.5
    %v182 = vmul.f32 %v178, 0.044715
    %v183 = vmul.f32 %v182, %v178
    %v184 = vmul.f32 %v183, %v178
    %v185 = vadd.f32 %v178, %v184
    %v186 = vmul.f32 %v185, 0.7978846
    %v187 = vtanh.pop %v186
    %v188 = vadd.f32 %v187, 1.0
    %v189 = vmul.f32 %v181, %v188
    %v190 = vld [vmem:[%s1 + $0x30] sm:$0xff]
    %v191 = vld [vmem:[%s1 + $0x38] sm:$0xff]
    %v192 = vld [vmem:[%s1 + $0x40] sm:$0xff]
    %v193 = vld [vmem:[%s1 + $0x48] sm:$0xff]
    %v194 = vlaneseq
    %v195 = vshrl.u32 %v194, 7
    %v196 = vsub.s32 1, %v195
    %v197 = vrot.slane %v13, %v196
    %v199 = vsel %vm107, %v189, 0
    %201 = vmatprep.subr.mxu0 0.0
    %202 = vmatpush1.msra.mxu0 %v190
    %203 = vmatprep.subr.mxu0 0.0
    %204 = vmatpush1.msra.mxu0 %v191
    %205 = vmatprep.subr.mxu0 0.0
    %206 = vmatpush1.msra.mxu0 %v192
    %207 = vmatprep.subr.mxu0 0.0
    %208 = vmatpush1.msra.mxu0 %v193
    %209 = vmatprep.subr.mxu0 0.0
    %210 = vmatpush1.msra.mxu0 0.0
    %211 = vmatprep.subr.mxu0 0.0
    %212 = vmatpush1.msra.mxu0 0.0
    %213 = vmatprep.subr.mxu0 0.0
    %214 = vmatpush1.msra.mxu0 0.0
    %215 = vmatprep.subr.mxu0 0.0
    %216 = vmatpush1.msra.mxu0 0.0
    %217 = vmatprep.subr.mxu0 0.0
    %218 = vmatpush1.msra.mxu0 0.0
    %219 = vmatprep.subr.mxu0 0.0
    %220 = vmatpush1.msra.mxu0 0.0
    %221 = vmatprep.subr.mxu0 0.0
    %222 = vmatpush1.msra.mxu0 0.0
    %223 = vmatprep.subr.mxu0 0.0
    %224 = vmatpush1.msra.mxu0 0.0
    %225 = vmatprep.subr.mxu0 0.0
    %226 = vmatpush1.msra.mxu0 0.0
    %227 = vmatprep.subr.mxu0 0.0
    %228 = vmatpush1.msra.mxu0 0.0
    %229 = vmatprep.subr.mxu0 0.0
    %230 = vmatpush1.msra.mxu0 0.0
    %231 = vmatprep.subr.mxu0 0.0
    %232 = vmatpush1.msra.mxu0 0.0
    %233 = vmatprep.subr.mxu0 0.0
    %234 = vmatpush1.msra.mxu0 0.0
    %235 = vmatprep.subr.mxu0 0.0
    %236 = vmatpush1.msra.mxu0 0.0
    %237 = vmatprep.subr.mxu0 0.0
    %238 = vmatpush1.msra.mxu0 0.0
    %239 = vmatprep.subr.mxu0 0.0
    %240 = vmatpush1.msra.mxu0 0.0
    %241 = vmatprep.subr.mxu0 0.0
    %242 = vmatpush1.msra.mxu0 0.0
    %243 = vmatprep.subr.mxu0 0.0
    %244 = vmatpush1.msra.mxu0 0.0
    %245 = vmatprep.subr.mxu0 0.0
    %246 = vmatpush1.msra.mxu0 0.0
    %247 = vmatprep.subr.mxu0 0.0
    %248 = vmatpush1.msra.mxu0 0.0
    %249 = vmatprep.subr.mxu0 0.0
    %250 = vmatpush1.msra.mxu0 0.0
    %251 = vmatprep.subr.mxu0 0.0
    %252 = vmatpush1.msra.mxu0 0.0
    %253 = vmatprep.subr.mxu0 0.0
    %254 = vmatpush1.msra.mxu0 0.0
    %255 = vmatprep.subr.mxu0 0.0
    %256 = vmatpush1.msra.mxu0 0.0
    %257 = vmatprep.subr.mxu0 0.0
    %258 = vmatpush1.msra.mxu0 0.0
    %259 = vmatprep.subr.mxu0 0.0
    %260 = vmatpush1.msra.mxu0 0.0
    %261 = vmatprep.subr.mxu0 0.0
    %262 = vmatpush1.msra.mxu0 0.0
    %263 = vmatprep.subr.mxu0 0.0
    %264 = vmatpush1.msra.mxu0 0.0
    %265 = vmatprep.mubr.f32.mxu0 0.0
    %266 = vmatmul.mubr.f32.gmra.mrb[0].mxu0 %v199
    %v267 = vpop.f32.mrb[0].mxu0
    %v268 = vadd.f32 %v197, %v267
    %v269 = vpop.f32.mrb[0].mxu0
    %270 = vdwg.mxu0
    %v271 = vmul.f32 %v268, 0.5
    %v272 = vmul.f32 %v268, 0.044715
    %v273 = vmul.f32 %v272, %v268
    %v274 = vmul.f32 %v273, %v268
    %v275 = vadd.f32 %v268, %v274
    %v276 = vmul.f32 %v275, 0.7978846
    %v277 = vtanh.pop %v276
    %v278 = vadd.f32 %v277, 1.0
    %v279 = vmul.f32 %v271, %v278
    %v280 = vld [vmem:[%s1 + $0x50] sm:$0xff]
    %v281 = vld [vmem:[%s1 + $0x58] sm:$0xff]
    %v282 = vld [vmem:[%s1 + $0x60] sm:$0xff]
    %v283 = vld [vmem:[%s1 + $0x68] sm:$0xff]
    %v284 = vlaneseq
    %v285 = vshrl.u32 %v284, 7
    %v286 = vsub.s32 2, %v285
    %v287 = vrot.slane %v13, %v286
    %v289 = vsel %vm107, %v279, 0
    %291 = vmatprep.subr.mxu0 0.0
    %292 = vmatpush1.msra.mxu0 %v280
    %293 = vmatprep.subr.mxu0 0.0
    %294 = vmatpush1.msra.mxu0 %v281
    %295 = vmatprep.subr.mxu0 0.0
    %296 = vmatpush1.msra.mxu0 %v282
    %297 = vmatprep.subr.mxu0 0.0
    %298 = vmatpush1.msra.mxu0 %v283
    %299 = vmatprep.subr.mxu0 0.0
    %300 = vmatpush1.msra.mxu0 0.0
    %301 = vmatprep.subr.mxu0 0.0
    %302 = vmatpush1.msra.mxu0 0.0
    %303 = vmatprep.subr.mxu0 0.0
    %304 = vmatpush1.msra.mxu0 0.0
    %305 = vmatprep.subr.mxu0 0.0
    %306 = vmatpush1.msra.mxu0 0.0
    %307 = vmatprep.subr.mxu0 0.0
    %308 = vmatpush1.msra.mxu0 0.0
    %309 = vmatprep.subr.mxu0 0.0
    %310 = vmatpush1.msra.mxu0 0.0
    %311 = vmatprep.subr.mxu0 0.0
    %312 = vmatpush1.msra.mxu0 0.0
    %313 = vmatprep.subr.mxu0 0.0
    %314 = vmatpush1.msra.mxu0 0.0
    %315 = vmatprep.subr.mxu0 0.0
    %316 = vmatpush1.msra.mxu0 0.0
    %317 = vmatprep.subr.mxu0 0.0
    %318 = vmatpush1.msra.mxu0 0.0
    %319 = vmatprep.subr.mxu0 0.0
    %320 = vmatpush1.msra.mxu0 0.0
    %321 = vmatprep.subr.mxu0 0.0
    %322 = vmatpush1.msra.mxu0 0.0
    %323 = vmatprep.subr.mxu0 0.0
    %324 = vmatpush1.msra.mxu0 0.0
    %325 = vmatprep.subr.mxu0 0.0
    %326 = vmatpush1.msra.mxu0 0.0
    %327 = vmatprep.subr.mxu0 0.0
    %328 = vmatpush1.msra.mxu0 0.0
    %329 = vmatprep.subr.mxu0 0.0
    %330 = vmatpush1.msra.mxu0 0.0
    %331 = vmatprep.subr.mxu0 0.0
    %332 = vmatpush1.msra.mxu0 0.0
    %333 = vmatprep.subr.mxu0 0.0
    %334 = vmatpush1.msra.mxu0 0.0
    %335 = vmatprep.subr.mxu0 0.0
    %336 = vmatpush1.msra.mxu0 0.0
    %337 = vmatprep.subr.mxu0 0.0
    %338 = vmatpush1.msra.mxu0 0.0
    %339 = vmatprep.subr.mxu0 0.0
    %340 = vmatpush1.msra.mxu0 0.0
    %341 = vmatprep.subr.mxu0 0.0
    %342 = vmatpush1.msra.mxu0 0.0
    %343 = vmatprep.subr.mxu0 0.0
    %344 = vmatpush1.msra.mxu0 0.0
    %345 = vmatprep.subr.mxu0 0.0
    %346 = vmatpush1.msra.mxu0 0.0
    %347 = vmatprep.subr.mxu0 0.0
    %348 = vmatpush1.msra.mxu0 0.0
    %349 = vmatprep.subr.mxu0 0.0
    %350 = vmatpush1.msra.mxu0 0.0
    %351 = vmatprep.subr.mxu0 0.0
    %352 = vmatpush1.msra.mxu0 0.0
    %353 = vmatprep.subr.mxu0 0.0
    %354 = vmatpush1.msra.mxu0 0.0
    %355 = vmatprep.mubr.f32.mxu0 0.0
    %356 = vmatmul.mubr.f32.gmra.mrb[0].mxu0 %v289
    %v357 = vpop.f32.mrb[0].mxu0
    %v358 = vadd.f32 %v287, %v357
    %v359 = vpop.f32.mrb[0].mxu0
    %360 = vdwg.mxu0
    %v361 = vmul.f32 %v358, 0.5
    %v362 = vmul.f32 %v358, 0.044715
    %v363 = vmul.f32 %v362, %v358
    %v364 = vmul.f32 %v363, %v358
    %v365 = vadd.f32 %v358, %v364
    %v366 = vmul.f32 %v365, 0.7978846
    %v367 = vtanh.pop %v366
    %v368 = vadd.f32 %v367, 1.0
    %v369 = vmul.f32 %v361, %v368
    %v370 = vld [vmem:[%s1 + $0x70] sm:$0xff]
    %v371 = vld [vmem:[%s1 + $0x78] sm:$0xff]
    %v372 = vld [vmem:[%s1 + $0x80] sm:$0xff]
    %v373 = vld [vmem:[%s1 + $0x88] sm:$0xff]
    %v374 = vlaneseq
    %v375 = vshrl.u32 %v374, 7
    %v376 = vsub.s32 3, %v375
    %v377 = vrot.slane %v13, %v376
    %v379 = vsel %vm107, %v369, 0
    %381 = vmatprep.subr.mxu0 0.0
    %382 = vmatpush1.msra.mxu0 %v370
    %383 = vmatprep.subr.mxu0 0.0
    %384 = vmatpush1.msra.mxu0 %v371
    %385 = vmatprep.subr.mxu0 0.0
    %386 = vmatpush1.msra.mxu0 %v372
    %387 = vmatprep.subr.mxu0 0.0
    %388 = vmatpush1.msra.mxu0 %v373
    %389 = vmatprep.subr.mxu0 0.0
    %390 = vmatpush1.msra.mxu0 0.0
    %391 = vmatprep.subr.mxu0 0.0
    %392 = vmatpush1.msra.mxu0 0.0
    %393 = vmatprep.subr.mxu0 0.0
    %394 = vmatpush1.msra.mxu0 0.0
    %395 = vmatprep.subr.mxu0 0.0
    %396 = vmatpush1.msra.mxu0 0.0
    %397 = vmatprep.subr.mxu0 0.0
    %398 = vmatpush1.msra.mxu0 0.0
    %399 = vmatprep.subr.mxu0 0.0
    %400 = vmatpush1.msra.mxu0 0.0
    %401 = vmatprep.subr.mxu0 0.0
    %402 = vmatpush1.msra.mxu0 0.0
    %403 = vmatprep.subr.mxu0 0.0
    %404 = vmatpush1.msra.mxu0 0.0
    %405 = vmatprep.subr.mxu0 0.0
    %406 = vmatpush1.msra.mxu0 0.0
    %407 = vmatprep.subr.mxu0 0.0
    %408 = vmatpush1.msra.mxu0 0.0
    %409 = vmatprep.subr.mxu0 0.0
    %410 = vmatpush1.msra.mxu0 0.0
    %411 = vmatprep.subr.mxu0 0.0
    %412 = vmatpush1.msra.mxu0 0.0
    %413 = vmatprep.subr.mxu0 0.0
    %414 = vmatpush1.msra.mxu0 0.0
    %415 = vmatprep.subr.mxu0 0.0
    %416 = vmatpush1.msra.mxu0 0.0
    %417 = vmatprep.subr.mxu0 0.0
    %418 = vmatpush1.msra.mxu0 0.0
    %419 = vmatprep.subr.mxu0 0.0
    %420 = vmatpush1.msra.mxu0 0.0
    %421 = vmatprep.subr.mxu0 0.0
    %422 = vmatpush1.msra.mxu0 0.0
    %423 = vmatprep.subr.mxu0 0.0
    %424 = vmatpush1.msra.mxu0 0.0
    %425 = vmatprep.subr.mxu0 0.0
    %426 = vmatpush1.msra.mxu0 0.0
    %427 = vmatprep.subr.mxu0 0.0
    %428 = vmatpush1.msra.mxu0 0.0
    %429 = vmatprep.subr.mxu0 0.0
    %430 = vmatpush1.msra.mxu0 0.0
    %431 = vmatprep.subr.mxu0 0.0
    %432 = vmatpush1.msra.mxu0 0.0
    %433 = vmatprep.subr.mxu0 0.0
    %434 = vmatpush1.msra.mxu0 0.0
    %435 = vmatprep.subr.mxu0 0.0
    %436 = vmatpush1.msra.mxu0 0.0
    %437 = vmatprep.subr.mxu0 0.0
    %438 = vmatpush1.msra.mxu0 0.0
    %439 = vmatprep.subr.mxu0 0.0
    %440 = vmatpush1.msra.mxu0 0.0
    %441 = vmatprep.subr.mxu0 0.0
    %442 = vmatpush1.msra.mxu0 0.0
    %443 = vmatprep.subr.mxu0 0.0
    %444 = vmatpush1.msra.mxu0 0.0
    %445 = vmatprep.mubr.f32.mxu0 0.0
    %446 = vmatmul.mubr.f32.gmra.mrb[0].mxu0 %v379
    %v447 = vpop.f32.mrb[0].mxu0
    %v448 = vadd.f32 %v377, %v447
    %v449 = vpop.f32.mrb[0].mxu0
    %450 = vdwg.mxu0
    %v451 = vmul.f32 %v448, 0.5
    %v452 = vmul.f32 %v448, 0.044715
    %v453 = vmul.f32 %v452, %v448
    %v454 = vmul.f32 %v453, %v448
    %v455 = vadd.f32 %v448, %v454
    %v456 = vmul.f32 %v455, 0.7978846
    %v457 = vtanh.pop %v456
    %v458 = vadd.f32 %v457, 1.0
    %v459 = vmul.f32 %v451, %v458
    %v460 = vld [vmem:[%s1 + $0x90] sm:$0xff]
    %v461 = vld [vmem:[%s1 + $0x98] sm:$0xff]
    %v462 = vld [vmem:[%s1 + $0xa0] sm:$0xff]
    %v463 = vld [vmem:[%s1 + $0xa8] sm:$0xff]
    %v464 = vlaneseq
    %v465 = vshrl.u32 %v464, 7
    %v466 = vsub.s32 4, %v465
    %v467 = vrot.slane %v13, %v466
    %v469 = vsel %vm107, %v459, 0
    %471 = vmatprep.subr.mxu0 0.0
    %472 = vmatpush1.msra.mxu0 %v460
    %473 = vmatprep.subr.mxu0 0.0
    %474 = vmatpush1.msra.mxu0 %v461
    %475 = vmatprep.subr.mxu0 0.0
    %476 = vmatpush1.msra.mxu0 %v462
    %477 = vmatprep.subr.mxu0 0.0
    %478 = vmatpush1.msra.mxu0 %v463
    %479 = vmatprep.subr.mxu0 0.0
    %480 = vmatpush1.msra.mxu0 0.0
    %481 = vmatprep.subr.mxu0 0.0
    %482 = vmatpush1.msra.mxu0 0.0
    %483 = vmatprep.subr.mxu0 0.0
    %484 = vmatpush1.msra.mxu0 0.0
    %485 = vmatprep.subr.mxu0 0.0
    %486 = vmatpush1.msra.mxu0 0.0
    %487 = vmatprep.subr.mxu0 0.0
    %488 = vmatpush1.msra.mxu0 0.0
    %489 = vmatprep.subr.mxu0 0.0
    %490 = vmatpush1.msra.mxu0 0.0
    %491 = vmatprep.subr.mxu0 0.0
    %492 = vmatpush1.msra.mxu0 0.0
    %493 = vmatprep.subr.mxu0 0.0
    %494 = vmatpush1.msra.mxu0 0.0
    %495 = vmatprep.subr.mxu0 0.0
    %496 = vmatpush1.msra.mxu0 0.0
    %497 = vmatprep.subr.mxu0 0.0
    %498 = vmatpush1.msra.mxu0 0.0
    %499 = vmatprep.subr.mxu0 0.0
    %500 = vmatpush1.msra.mxu0 0.0
    %501 = vmatprep.subr.mxu0 0.0
    %502 = vmatpush1.msra.mxu0 0.0
    %503 = vmatprep.subr.mxu0 0.0
    %504 = vmatpush1.msra.mxu0 0.0
    %505 = vmatprep.subr.mxu0 0.0
    %506 = vmatpush1.msra.mxu0 0.0
    %507 = vmatprep.subr.mxu0 0.0
    %508 = vmatpush1.msra.mxu0 0.0
    %509 = vmatprep.subr.mxu0 0.0
    %510 = vmatpush1.msra.mxu0 0.0
    %511 = vmatprep.subr.mxu0 0.0
    %512 = vmatpush1.msra.mxu0 0.0
    %513 = vmatprep.subr.mxu0 0.0
    %514 = vmatpush1.msra.mxu0 0.0
    %515 = vmatprep.subr.mxu0 0.0
    %516 = vmatpush1.msra.mxu0 0.0
    %517 = vmatprep.subr.mxu0 0.0
    %518 = vmatpush1.msra.mxu0 0.0
    %519 = vmatprep.subr.mxu0 0.0
    %520 = vmatpush1.msra.mxu0 0.0
    %521 = vmatprep.subr.mxu0 0.0
    %522 = vmatpush1.msra.mxu0 0.0
    %523 = vmatprep.subr.mxu0 0.0
    %524 = vmatpush1.msra.mxu0 0.0
    %525 = vmatprep.subr.mxu0 0.0
    %526 = vmatpush1.msra.mxu0 0.0
    %527 = vmatprep.subr.mxu0 0.0
    %528 = vmatpush1.msra.mxu0 0.0
    %529 = vmatprep.subr.mxu0 0.0
    %530 = vmatpush1.msra.mxu0 0.0
    %531 = vmatprep.subr.mxu0 0.0
    %532 = vmatpush1.msra.mxu0 0.0
    %533 = vmatprep.subr.mxu0 0.0
    %534 = vmatpush1.msra.mxu0 0.0
    %535 = vmatprep.mubr.f32.mxu0 0.0
    %536 = vmatmul.mubr.f32.gmra.mrb[0].mxu0 %v469
    %v537 = vpop.f32.mrb[0].mxu0
    %v538 = vadd.f32 %v467, %v537
    %v539 = vpop.f32.mrb[0].mxu0
    %540 = vdwg.mxu0
    %v541 = vadd.f32 %v12, %v538
    %vm542 = vcmask 72704
    %543 = vst.msk [vmem:[#allocation2] sm:$0xff] %vm542, %v541
    // Predicated region
    $region10: #{tpu_custom_call.1} parent=1 // pred_check
      _
    $region11: #{tpu_custom_call.1} parent=1 // pred_check_branch
      %545 = sbr.rel (0) target = $region13
    $region12: #{tpu_custom_call.1} parent=1 // pred_region
      %s547 = ssub.s32 128, 128
      %548 = vsyncadd [#allocation3], %s547
      %s550 = sshll.u32 [#allocation2], 4
      %s551 = int_to_ptr.vmem [resolvable:$true] %s550
      %553 = dma.vmem_to_hbm [thread:$0]  %s551, 128, %s2, [#allocation3]
    $region13: #{tpu_custom_call.1} parent=1 // pred_fallthru
      _
    // Predicated region
    $region14: #{tpu_custom_call.1} parent=1 // pred_check
      _
    $region15: #{tpu_custom_call.1} parent=1 // pred_check_branch
      %555 = sbr.rel (0) target = $region17
    $region16: #{tpu_custom_call.1} parent=1 // pred_region
      %556 = dma.done [#allocation3], 128
    $region17: #{tpu_custom_call.1} parent=1 // pred_fallthru
      _
    %557 = vsyncpa [#allocation3], 1

</llo_original>
